<compile_context>
chip_gen: v6e
topology: v6e:2x2x1
jax: 0.10.0
libtpu: 0.0.40
codegen_flags: <defaults>
</compile_context>

<pallas_src>
import jax
import jax.numpy as jnp
from jax.experimental import pallas as pl
from jax.experimental.pallas import tpu as pltpu


def _round_up(x, m):
    return (x + m - 1) // m * m


def _global_mask_kernel(feat_ref, idx_ref, vec_ref, out_ref):
    # feat_ref: (TN, C) feature tile        (caller dtype)
    # idx_ref : (TN, 1) int32 batch index per point
    # vec_ref : (B,  C) gating vector (resident, same block every step)
    # out_ref : (TN, C)
    num_batches = vec_ref.shape[0]
    compute_dtype = out_ref.dtype  # bf16 math for bf16 features, f32 for f32

    # gate = sigmoid(vecter) * 2 on the tiny (B, C) block; transcendental in f32,
    # then cast ONCE to the compute dtype (EUP op, hidden under the tile DMA).
    gate = (jax.nn.sigmoid(vec_ref[...].astype(jnp.float32)) * 2.0).astype(compute_dtype)

    idx = idx_ref[...]  # (TN, 1) int32

    # B-way VPU select gather: gathered[r, :] = gate[idx[r], :].
    # Start from gate[0] (no zeros init).  Rows with idx outside [0, B) therefore
    # use gate row 0 (PyTorch advanced indexing would raise instead).  Rows in the
    # ragged edge of the last tile are garbage but are never written back.
    gathered = gate[0:1, :]  # (1, C); broadcasting happens inside where / multiply
    for b in range(1, num_batches):  # B is small (batch size); unrolls to B-1 selects
        gathered = jnp.where(idx == b, gate[b:b + 1, :], gathered)

    out_ref[...] = feat_ref[...] * gathered


def global_mask_layer_v2(features, point_idx, vecter, *, tile_n=None):
    """features: [N, C], point_idx: [N] int, vecter: [B, C] -> [N, C] (features dtype)."""
    n, c = features.shape
    b, c2 = vecter.shape
    assert c == c2, "channel dims must match (mirrors the torch assert)"

    dtype = features.dtype
    itemsize = jnp.dtype(dtype).itemsize

    if tile_n is None:
        # Byte-sized row tile: target ~4 MiB per features block (so double-buffered
        # feat+out ~= 16 MiB, within the 32 MiB VMEM limit requested below).
        target_bytes = 4 * 1024 * 1024
        tile_n = max(1024, target_bytes // max(1, c * itemsize))
        # Keep >= ~8 grid steps when N is large enough so v7x's two TensorCores each
        # get several pipelined tiles; never shrink below 1024 rows for this.
        tile_n = min(tile_n, max(1024, _round_up(-(-n // 8), 8)))
    tile_n = int(tile_n)
    # Multiple of 8 sublanes, never larger than (sublane-rounded) N.
    tile_n = _round_up(min(max(tile_n, 8), _round_up(n, 8)), 8)

    grid = (pl.cdiv(n, tile_n),)  # ragged last tile handled by Pallas edge masking

    idx2d = point_idx.astype(jnp.int32).reshape(n, 1)

    out = pl.pallas_call(
        _global_mask_kernel,
        out_shape=jax.ShapeDtypeStruct((n, c), dtype),
        grid_spec=pltpu.PrefetchScalarGridSpec(
            num_scalar_prefetch=0,
            grid=grid,
            in_specs=[
                pl.BlockSpec((tile_n, c), lambda i: (i, 0)),  # features tile
                pl.BlockSpec((tile_n, 1), lambda i: (i, 0)),  # point_idx tile
                pl.BlockSpec((b, c), lambda i: (0, 0)),       # full vecter, resident
            ],
            out_specs=pl.BlockSpec((tile_n, c), lambda i: (i, 0)),
        ),
        compiler_params=pltpu.CompilerParams(
            dimension_semantics=("parallel",),     # v7x: row tiles split across 2 TCs
            vmem_limit_bytes=32 * 1024 * 1024,     # fits v5e default headroom + v7x VMEM
        ),
    )(features, idx2d, vecter)
    return out


def _reference_f32(features, point_idx, vecter):
    f = features.astype(jnp.float32)
    v = vecter.astype(jnp.float32)
    return f * jax.nn.sigmoid(v[point_idx]) * 2.0


if __name__ == "__main__":
    key = jax.random.PRNGKey(0)
    k1, k2, k3, k4, k5, k6, k7, k8, k9 = jax.random.split(key, 9)

    # Case 1: f32, lane-dense C, explicit small tile -> multi-step grid with a
    # ragged last row tile (1000 = 3*256 + 232), exercises edge masking.
    N, C, B = 1000, 128, 4
    features = jax.random.normal(k1, (N, C), dtype=jnp.float32)
    vecter = jax.random.normal(k2, (B, C), dtype=jnp.float32)
    point_idx = jax.random.randint(k3, (N,), 0, B, dtype=jnp.int32)

    out = jax.block_until_ready(global_mask_layer_v2(features, point_idx, vecter, tile_n=256))
    ref = _reference_f32(features, point_idx, vecter)
    assert out.shape == ref.shape and out.dtype == jnp.float32
    assert jnp.allclose(out, ref, atol=1e-5, rtol=1e-5), "case 1 mismatch vs reference"

    # Case 2: f32, C not a multiple of 128 (no HBM padding; masked lane stores).
    N2, C2, B2 = 200, 96, 3
    f2 = jax.random.normal(k4, (N2, C2), dtype=jnp.float32)
    v2 = jax.random.normal(k5, (B2, C2), dtype=jnp.float32)
    p2 = jax.random.randint(k6, (N2,), 0, B2, dtype=jnp.int32)

    o2 = jax.block_until_ready(global_mask_layer_v2(f2, p2, v2))
    r2 = _reference_f32(f2, p2, v2)
    assert o2.shape == r2.shape and o2.dtype == jnp.float32
    assert jnp.allclose(o2, r2, atol=1e-5, rtol=1e-5), "case 2 mismatch vs reference"

    # Case 3: bf16 features + bf16 vecter (bf16 VALU path, bf16 HBM traffic) with a
    # row overhang in the single tile (500 rows, 504-row block).
    N3, C3, B3 = 500, 64, 2
    f3 = jax.random.normal(k7, (N3, C3), dtype=jnp.bfloat16)
    v3 = jax.random.normal(k8, (B3, C3), dtype=jnp.bfloat16)
    p3 = jax.random.randint(k9, (N3,), 0, B3, dtype=jnp.int32)

    o3 = jax.block_until_ready(global_mask_layer_v2(f3, p3, v3))
    r3 = _reference_f32(f3, p3, v3)
    assert o3.shape == r3.shape and o3.dtype == jnp.bfloat16
    assert jnp.allclose(o3.astype(jnp.float32), r3, atol=3e-2, rtol=3e-2), "case 3 mismatch vs reference"

    print("KERNEL_OK")
</pallas_src>

<mosaic_0001>
module attributes {stable_mosaic.version = 11 : i64} {
  func.func @_global_mask_kernel(%arg0: i32, %arg1: memref<256x128xf32, #tpu.memory_space<vmem>>, %arg2: memref<256x1xi32, #tpu.memory_space<vmem>>, %arg3: memref<4x128xf32, #tpu.memory_space<vmem>>, %arg4: memref<256x128xf32, #tpu.memory_space<vmem>>) attributes {dimension_semantics = [#tpu.dimension_semantics<parallel>], iteration_bounds = array<i64: 4>, scalar_prefetch = 0 : i64, scratch_operands = 0 : i64, tpu.core_type = #tpu.core_type<tc>, window_params = [{transform_indices = @transform_0, window_bounds = array<i64: 256, 128>}, {transform_indices = @transform_1, window_bounds = array<i64: 256, 1>}, {pipeline_mode = #tpu.pipeline_mode<synchronous>, transform_indices = @transform_2, window_bounds = array<i64: 4, 128>}, {transform_indices = @transform_3, window_bounds = array<i64: 256, 128>}]} {
    %c0 = arith.constant 0 : index
    %c0_0 = arith.constant 0 : index
    %0 = vector.load %arg3[%c0, %c0_0] : memref<4x128xf32, #tpu.memory_space<vmem>>, vector<4x128xf32>
    %1 = arith.negf %0 : vector<4x128xf32>
    %2 = math.exp %1 : vector<4x128xf32>
    %cst = arith.constant 1.000000e+00 : f32
    %3 = vector.broadcast %cst : f32 to vector<4x128xf32>
    %4 = arith.addf %3, %2 : vector<4x128xf32>
    %5 = arith.divf %3, %4 : vector<4x128xf32>
    %cst_1 = arith.constant 2.000000e+00 : f32
    %6 = vector.broadcast %cst_1 : f32 to vector<4x128xf32>
    %7 = arith.mulf %5, %6 : vector<4x128xf32>
    %c0_2 = arith.constant 0 : index
    %c0_3 = arith.constant 0 : index
    %8 = vector.load %arg2[%c0_2, %c0_3] : memref<256x1xi32, #tpu.memory_space<vmem>>, vector<256x1xi32>
    %9 = vector.extract_strided_slice %7 {offsets = [0, 0], sizes = [1, 128], strides = [1, 1]} : vector<4x128xf32> to vector<1x128xf32>
    %c1_i32 = arith.constant 1 : i32
    %10 = vector.broadcast %c1_i32 : i32 to vector<256x1xi32>
    %11 = arith.cmpi eq, %8, %10 : vector<256x1xi32>
    %12 = vector.extract_strided_slice %7 {offsets = [1, 0], sizes = [1, 128], strides = [1, 1]} : vector<4x128xf32> to vector<1x128xf32>
    %13 = vector.shape_cast %11 : vector<256x1xi1> to vector<256x1xi1>
    %14 = vector.broadcast %13 : vector<256x1xi1> to vector<256x128xi1>
    %15 = vector.shape_cast %12 : vector<1x128xf32> to vector<1x128xf32>
    %16 = vector.broadcast %15 : vector<1x128xf32> to vector<256x128xf32>
    %17 = vector.shape_cast %9 : vector<1x128xf32> to vector<1x128xf32>
    %18 = vector.broadcast %17 : vector<1x128xf32> to vector<256x128xf32>
    %19 = arith.select %14, %16, %18 : vector<256x128xi1>, vector<256x128xf32>
    %c2_i32 = arith.constant 2 : i32
    %20 = vector.broadcast %c2_i32 : i32 to vector<256x1xi32>
    %21 = arith.cmpi eq, %8, %20 : vector<256x1xi32>
    %22 = vector.extract_strided_slice %7 {offsets = [2, 0], sizes = [1, 128], strides = [1, 1]} : vector<4x128xf32> to vector<1x128xf32>
    %23 = vector.shape_cast %21 : vector<256x1xi1> to vector<256x1xi1>
    %24 = vector.broadcast %23 : vector<256x1xi1> to vector<256x128xi1>
    %25 = vector.shape_cast %22 : vector<1x128xf32> to vector<1x128xf32>
    %26 = vector.broadcast %25 : vector<1x128xf32> to vector<256x128xf32>
    %27 = arith.select %24, %26, %19 : vector<256x128xi1>, vector<256x128xf32>
    %c3_i32 = arith.constant 3 : i32
    %28 = vector.broadcast %c3_i32 : i32 to vector<256x1xi32>
    %29 = arith.cmpi eq, %8, %28 : vector<256x1xi32>
    %30 = vector.extract_strided_slice %7 {offsets = [3, 0], sizes = [1, 128], strides = [1, 1]} : vector<4x128xf32> to vector<1x128xf32>
    %31 = vector.shape_cast %29 : vector<256x1xi1> to vector<256x1xi1>
    %32 = vector.broadcast %31 : vector<256x1xi1> to vector<256x128xi1>
    %33 = vector.shape_cast %30 : vector<1x128xf32> to vector<1x128xf32>
    %34 = vector.broadcast %33 : vector<1x128xf32> to vector<256x128xf32>
    %35 = arith.select %32, %34, %27 : vector<256x128xi1>, vector<256x128xf32>
    %c0_4 = arith.constant 0 : index
    %c0_5 = arith.constant 0 : index
    %36 = vector.load %arg1[%c0_4, %c0_5] : memref<256x128xf32, #tpu.memory_space<vmem>>, vector<256x128xf32>
    %37 = arith.mulf %36, %35 : vector<256x128xf32>
    %c0_6 = arith.constant 0 : index
    %c0_7 = arith.constant 0 : index
    %38 = vector.load %arg4[%c0_6, %c0_7] : memref<256x128xf32, #tpu.memory_space<vmem>>, vector<256x128xf32>
    tpu.vector_store %arg4[%c0_6, %c0_7], %37 {strides = array<i32>} : memref<256x128xf32, #tpu.memory_space<vmem>>, vector<256x128xf32>,
    return
  }
  func.func @transform_0(%arg0: i32) -> (i32, i32) {
    %c0_i32 = arith.constant 0 : i32
    %c0_i32_0 = arith.constant 0 : i32
    return %arg0, %c0_i32 : i32, i32
  }
  func.func @transform_1(%arg0: i32) -> (i32, i32) {
    %c0_i32 = arith.constant 0 : i32
    %c0_i32_0 = arith.constant 0 : i32
    return %arg0, %c0_i32 : i32, i32
  }
  func.func @transform_2(%arg0: i32) -> (i32, i32) {
    %c0_i32 = arith.constant 0 : i32
    %c0_i32_0 = arith.constant 0 : i32
    %c0_i32_1 = arith.constant 0 : i32
    return %c0_i32, %c0_i32_0 : i32, i32
  }
  func.func @transform_3(%arg0: i32) -> (i32, i32) {
    %c0_i32 = arith.constant 0 : i32
    %c0_i32_0 = arith.constant 0 : i32
    return %arg0, %c0_i32 : i32, i32
  }
}

</mosaic_0001>

<llo_original>
// kernel: tpu_custom_call.1
$region0: #{tpu_custom_call.1}
  #allocation0 [shape = 'u32[]', space=smem, size = 0x4, offset = 0x4, fixed_abs, tag = 'smem constant byte address 0x4 - core index']
  #allocation1 [shape = 'u32[144,128]{1,0:T(1,128)}', space=vmem, size = 0x12000, scoped, tag = 'internal scratch']
  %s0 = inlined_call_operand.vmem [shape: f32[1000,128], index: 0, kind: input, shape index: {}]
  %s1 = inlined_call_operand.vmem [shape: s32[1000,1], index: 1, kind: input, shape index: {}]
  %s2 = inlined_call_operand.vmem [shape: f32[4,128], index: 2, kind: input, shape index: {}]
  %s3 = inlined_call_operand.hbm [shape: f32[1000,128], index: 3, kind: output, shape index: {}]
  %s4 = sld [smem:[#allocation0]]
  $region45: #{tpu_custom_call.1} parent=0
    _
  %s6 = ssub.s32 1, %s4
  %s7 = scalar_select 0, %s6, %s4
  $region1: #{tpu_custom_call.1} parent=0
    #allocation2 [shape = 'u8[262144]{0}', space=vmem, size = 0x40000, scoped, tag = 'output window, operand 0']
    #allocation3 [shape = 's32[2]{0}', space=sflag, size = 0x8, scoped, tag = 'scoped memory for tpu_custom_call.1']
    %8 = vsyncpa [#allocation3], 0
    %s9 = scalar_lea.sflag [#allocation3], 1
    %10 = vsyncpa %s9, 0
    loop: start=0, step=1, limit=6
    $region2: #{tpu_custom_call.1} parent=1 // loop_pre_header
      _
    $region3: #{tpu_custom_call.1} parent=1 // loop_header
      %s12 = sphi 0, %s16
      %p13 = scmp.ge.s32.totalorder %s12, 6
      %s22 = sphi 0, %s24
      %s25 = sphi 0, %s22
      %s26 = sphi 0, %s25
      %s42 = sphi 0, %s26
      %s48 = sphi 0, %s50
      %s51 = sphi 0, %s48
      %s52 = sphi 0, %s51
      %s68 = sphi 0, %s52
      %s72 = sphi 0, %s72
      %s74 = sphi 0, %s72
      %s75 = sphi 0, %s74
      %s89 = sphi 0, %s75
      %s95 = sphi 0, %s97
      %s98 = sphi 0, %s95
      %s99 = sphi 0, %s98
      %s115 = sphi 0, %s99
    $region4: #{tpu_custom_call.1} parent=1 // loop_header_branch
      %15 = sbr.rel (%p13) target = $region8
    $region5: #{tpu_custom_call.1} parent=1 // loop_body
      %s17 = ssub.s32 %s12, 1
      %s18 = ssub.s32 %s12, 2
      %s19 = sadd.s32 %s12, 1
      %s20 = ssub.s32 %s12, %s19
      %p21 = scmp.eq.s32.totalorder %s20, 0
      %s23 = sadd.s32 %s22, 1
      %s24 = scalar_select %p21, %s22, %s23
      %p27 = pneg %p21
      %p28 = scmp.eq.s32.totalorder %s12, 3
      %p29 = por %p27, %p28
      %p30 = scmp.ne.s32.totalorder %s22, %s25
      %p31 = scmp.eq.s32.totalorder %s12, 0
      %p32 = por %p30, %p31
      %p33 = scmp.ne.s32.totalorder %s22, %s25
      %p34 = scmp.eq.s32.totalorder %s17, 3
      %p35 = por %p33, %p34
      %p36 = scmp.ne.s32.totalorder %s25, %s26
      %p37 = scmp.eq.s32.totalorder %s17, 0
      %p38 = por %p36, %p37
      %p39 = scmp.ne.s32.totalorder %s25, %s26
      %p40 = scmp.eq.s32.totalorder %s18, 3
      %p41 = por %p39, %p40
      %p43 = scmp.ne.s32.totalorder %s26, %s42
      %p44 = scmp.eq.s32.totalorder %s18, 0
      %p45 = por %p43, %p44
      %s46 = ssub.s32 %s12, %s19
      %p47 = scmp.eq.s32.totalorder %s46, 0
      %s49 = sadd.s32 %s48, 1
      %s50 = scalar_select %p47, %s48, %s49
      %p53 = pneg %p47
      %p54 = scmp.eq.s32.totalorder %s12, 3
      %p55 = por %p53, %p54
      %p56 = scmp.ne.s32.totalorder %s48, %s51
      %p57 = scmp.eq.s32.totalorder %s12, 0
      %p58 = por %p56, %p57
      %p59 = scmp.ne.s32.totalorder %s48, %s51
      %p60 = scmp.eq.s32.totalorder %s17, 3
      %p61 = por %p59, %p60
      %p62 = scmp.ne.s32.totalorder %s51, %s52
      %p63 = scmp.eq.s32.totalorder %s17, 0
      %p64 = por %p62, %p63
      %p65 = scmp.ne.s32.totalorder %s51, %s52
      %p66 = scmp.eq.s32.totalorder %s18, 3
      %p67 = por %p65, %p66
      %p69 = scmp.ne.s32.totalorder %s52, %s68
      %p70 = scmp.eq.s32.totalorder %s18, 0
      %p71 = por %p69, %p70
      %s73 = sadd.s32 %s72, 1
      %p76 = scmp.eq.s32.totalorder %s12, 3
      %p77 = scmp.ne.s32.totalorder %s72, %s74
      %p78 = scmp.eq.s32.totalorder %s12, 0
      %p79 = por %p77, %p78
      %p80 = scmp.ne.s32.totalorder %s72, %s74
      %p81 = scmp.eq.s32.totalorder %s17, 3
      %p82 = por %p80, %p81
      %p83 = scmp.ne.s32.totalorder %s74, %s75
      %p84 = scmp.eq.s32.totalorder %s17, 0
      %p85 = por %p83, %p84
      %p86 = scmp.ne.s32.totalorder %s74, %s75
      %p87 = scmp.eq.s32.totalorder %s18, 3
      %p88 = por %p86, %p87
      %p90 = scmp.ne.s32.totalorder %s75, %s89
      %p91 = scmp.eq.s32.totalorder %s18, 0
      %p92 = por %p90, %p91
      %s93 = ssub.s32 %s12, %s19
      %p94 = scmp.eq.s32.totalorder %s93, 0
      %s96 = sadd.s32 %s95, 1
      %s97 = scalar_select %p94, %s95, %s96
      %p100 = pneg %p94
      %p101 = scmp.eq.s32.totalorder %s12, 3
      %p102 = por %p100, %p101
      %p103 = scmp.ne.s32.totalorder %s95, %s98
      %p104 = scmp.eq.s32.totalorder %s12, 0
      %p105 = por %p103, %p104
      %p106 = scmp.ne.s32.totalorder %s95, %s98
      %p107 = scmp.eq.s32.totalorder %s17, 3
      %p108 = por %p106, %p107
      %p109 = scmp.ne.s32.totalorder %s98, %s99
      %p110 = scmp.eq.s32.totalorder %s17, 0
      %p111 = por %p109, %p110
      %p112 = scmp.ne.s32.totalorder %s98, %s99
      %p113 = scmp.eq.s32.totalorder %s18, 3
      %p114 = por %p112, %p113
      %p116 = scmp.ne.s32.totalorder %s99, %s115
      %p117 = scmp.eq.s32.totalorder %s18, 0
      %p118 = por %p116, %p117
      %p119 = scmp.le.s32.totalorder 1, %s12
      %p120 = scmp.lt.s32.totalorder %s12, 5
      %p121 = pnand %p119, %p120
      %p122 = pneg %p121
      // Predicated region
      $region9: #{tpu_custom_call.1} parent=5 // pred_check
        _
      $region10: #{tpu_custom_call.1} parent=5 // pred_check_branch
        %124 = sbr.rel (%p121) target = $region12
      $region11: #{tpu_custom_call.1} parent=5 // pred_region
        %s125 = ssub.s32 %s12, 1
        // Predicated region
        $region13: #{tpu_custom_call.1} parent=11 // pred_check
          %p126 = pneg %p85
        $region14: #{tpu_custom_call.1} parent=11 // pred_check_branch
          %128 = sbr.rel (%p126) target = $region16
        $region15: #{tpu_custom_call.1} parent=11 // pred_region
          _
        $region16: #{tpu_custom_call.1} parent=11 // pred_fallthru
          _
      $region12: #{tpu_custom_call.1} parent=5 // pred_fallthru
        _
      %p129 = scmp.lt.s32.totalorder %s12, 4
      // Predicated region
      $region17: #{tpu_custom_call.1} parent=5 // pred_check
        %p130 = pneg %p129
      $region18: #{tpu_custom_call.1} parent=5 // pred_check_branch
        %132 = sbr.rel (%p130) target = $region20
      $region19: #{tpu_custom_call.1} parent=5 // pred_region
        // Predicated region
        $region21: #{tpu_custom_call.1} parent=19 // pred_check
          %p133 = pneg %p32
        $region22: #{tpu_custom_call.1} parent=19 // pred_check_branch
          %135 = sbr.rel (%p133) target = $region24
        $region23: #{tpu_custom_call.1} parent=19 // pred_region
          %s136 = smul.u32 32, %s12
          %s137 = ssub.s32 125, %s136
          %p138 = scmp.lt.s32.totalorder %s137, 32
          %s139 = scalar_select %p138, %s137, 32
          %s140 = smul.u32 128, %s139
          %p141 = scmp.lt.s32.totalorder %s136, 124
          %s142 = scalar_select %p141, %s136, 124
          %s143 = smul.addr %s142, 8
          %s144 = scalar_lea.vmem %s0, %s143
          %s145 = smul.u32 32, %s12
          %s146 = ssub.s32 125, %s145
          %p147 = scmp.lt.s32.totalorder %s146, 32
          %s148 = scalar_select %p147, %s146, 32
          %s149 = smul.u32 128, %s148
        $region24: #{tpu_custom_call.1} parent=19 // pred_fallthru
          _
        // Predicated region
        $region25: #{tpu_custom_call.1} parent=19 // pred_check
          %p150 = pneg %p58
        $region26: #{tpu_custom_call.1} parent=19 // pred_check_branch
          %152 = sbr.rel (%p150) target = $region28
        $region27: #{tpu_custom_call.1} parent=19 // pred_region
          %s153 = smul.u32 32, %s12
          %s154 = ssub.s32 125, %s153
          %p155 = scmp.lt.s32.totalorder %s154, 32
          %s156 = scalar_select %p155, %s154, 32
          %s157 = smul.u32 128, %s156
          %p158 = scmp.lt.s32.totalorder %s153, 124
          %s159 = scalar_select %p158, %s153, 124
          %s160 = smul.addr %s159, 8
          %s161 = scalar_lea.vmem %s1, %s160
          %s162 = smul.u32 32, %s12
          %s163 = ssub.s32 125, %s162
          %p164 = scmp.lt.s32.totalorder %s163, 32
          %s165 = scalar_select %p164, %s163, 32
          %s166 = smul.u32 128, %s165
        $region28: #{tpu_custom_call.1} parent=19 // pred_fallthru
          _
      $region20: #{tpu_custom_call.1} parent=5 // pred_fallthru
        _
      %p167 = scmp.le.s32.totalorder 1, %s12
      %p168 = scmp.lt.s32.totalorder %s12, 5
      %p169 = pnand %p167, %p168
      %p170 = pneg %p169
      // Predicated region
      $region29: #{tpu_custom_call.1} parent=5 // pred_check
        _
      $region30: #{tpu_custom_call.1} parent=5 // pred_check_branch
        %172 = sbr.rel (%p169) target = $region32
      $region31: #{tpu_custom_call.1} parent=5 // pred_region
        %s173 = ssub.s32 %s12, 1
        %s174 = smul.u32 32, %s17
        %s175 = ssub.s32 125, %s174
        %p176 = scmp.lt.s32.totalorder %s175, 32
        %s177 = scalar_select %p176, %s175, 32
        %s178 = smul.u32 128, %s177
        %p179 = scmp.lt.s32.totalorder %s174, 124
        %s180 = scalar_select %p179, %s174, 124
        %s181 = smul.addr %s180, 8
        %s182 = scalar_lea.vmem %s0, %s181
        %p183 = pneg %p38
        %p184 = pneg %p35
        %s185 = smul.u32 32, %s17
        %s186 = ssub.s32 125, %s185
        %p187 = scmp.lt.s32.totalorder %s186, 32
        %s188 = scalar_select %p187, %s186, 32
        %s189 = smul.u32 128, %s188
        %p190 = scmp.lt.s32.totalorder %s185, 124
        %s191 = scalar_select %p190, %s185, 124
        %s192 = smul.addr %s191, 8
        %s193 = scalar_lea.vmem %s1, %s192
        %p194 = pneg %p64
        %p195 = pneg %p61
        %p196 = pneg %p85
        %p197 = pneg %p82
        %p198 = pneg %p111
        %p199 = pneg %p108
        %s200 = sand.u32 %s98, 1
        %s201 = scalar_lea.sflag [#allocation3], %s200
        %s202 = sand.u32 %s98, 1
        %s203 = smul.addr %s202, 256
        %s204 = scalar_lea.vmem [#allocation2], %s203
        %s205 = smul.u32 32, %s17
        %s206 = ssub.s32 125, %s205
        %p207 = scmp.lt.s32.totalorder %s206, 32
        %s208 = scalar_select %p207, %s206, 32
        %s209 = smul.u32 128, %s208
        %p210 = scmp.lt.s32.totalorder %s205, 124
        %s211 = scalar_select %p210, %s205, 124
        %s212 = smul.addr %s211, 8
        %s213 = scalar_lea.vmem %s0, %s212
        %s214 = smul.u32 32, %s17
        %s215 = ssub.s32 125, %s214
        %p216 = scmp.lt.s32.totalorder %s215, 32
        %s217 = scalar_select %p216, %s215, 32
        %s218 = smul.u32 128, %s217
        %s219 = smul.u32 32, %s17
        %s220 = ssub.s32 125, %s219
        %p221 = scmp.lt.s32.totalorder %s220, 32
        %s222 = scalar_select %p221, %s220, 32
        %s223 = smul.u32 128, %s222
        %p224 = scmp.lt.s32.totalorder %s219, 124
        %s225 = scalar_select %p224, %s219, 124
        %s226 = smul.addr %s225, 8
        %s227 = scalar_lea.vmem %s1, %s226
        %s228 = smul.u32 32, %s17
        %s229 = ssub.s32 125, %s228
        %p230 = scmp.lt.s32.totalorder %s229, 32
        %s231 = scalar_select %p230, %s229, 32
        %s232 = smul.u32 128, %s231
        %s233 = smul.u32 32, %s17
        %s234 = ssub.s32 125, %s233
        %p235 = scmp.lt.s32.totalorder %s234, 32
        %s236 = scalar_select %p235, %s234, 32
        %s237 = smul.u32 128, %s236
        %v238 = vld [vmem:[%s2] sm:$0xf]
        %v239 = vxor.u32 %v238, 2147483648
        %v240 = vmul.f32 %v239, 1.442695
        %v241 = vpow.pop %v240
        %v242 = vadd.f32 %v241, 1.0
        %v243 = vrcp.pop %v242
        %v244 = vmul.f32 1.0, %v243
        %v245 = vmul.f32 %v244, 2.0
        %v246 = vld [vmem:[%s227] sm:$0xff]
        %v247 = vld [vmem:[%s227 + $0x8] sm:$0xff]
        %v248 = vld [vmem:[%s227 + $0x10] sm:$0xff]
        %v249 = vld [vmem:[%s227 + $0x18] sm:$0xff]
        %v250 = vld [vmem:[%s227 + $0x20] sm:$0xff]
        %v251 = vld [vmem:[%s227 + $0x28] sm:$0xff]
        %v252 = vld [vmem:[%s227 + $0x30] sm:$0xff]
        %v253 = vld [vmem:[%s227 + $0x38] sm:$0xff]
        %v254 = vld [vmem:[%s227 + $0x40] sm:$0xff]
        %v255 = vld [vmem:[%s227 + $0x48] sm:$0xff]
        %v256 = vld [vmem:[%s227 + $0x50] sm:$0xff]
        %v257 = vld [vmem:[%s227 + $0x58] sm:$0xff]
        %v258 = vld [vmem:[%s227 + $0x60] sm:$0xff]
        %v259 = vld [vmem:[%s227 + $0x68] sm:$0xff]
        %v260 = vld [vmem:[%s227 + $0x70] sm:$0xff]
        %v261 = vld [vmem:[%s227 + $0x78] sm:$0xff]
        %v262 = vld [vmem:[%s227 + $0x80] sm:$0xff]
        %v263 = vld [vmem:[%s227 + $0x88] sm:$0xff]
        %v264 = vld [vmem:[%s227 + $0x90] sm:$0xff]
        %v265 = vld [vmem:[%s227 + $0x98] sm:$0xff]
        %v266 = vld [vmem:[%s227 + $0xa0] sm:$0xff]
        %v267 = vld [vmem:[%s227 + $0xa8] sm:$0xff]
        %v268 = vld [vmem:[%s227 + $0xb0] sm:$0xff]
        %v269 = vld [vmem:[%s227 + $0xb8] sm:$0xff]
        %v270 = vld [vmem:[%s227 + $0xc0] sm:$0xff]
        %v271 = vld [vmem:[%s227 + $0xc8] sm:$0xff]
        %v272 = vld [vmem:[%s227 + $0xd0] sm:$0xff]
        %v273 = vld [vmem:[%s227 + $0xd8] sm:$0xff]
        %v274 = vld [vmem:[%s227 + $0xe0] sm:$0xff]
        %v275 = vld [vmem:[%s227 + $0xe8] sm:$0xff]
        %v276 = vld [vmem:[%s227 + $0xf0] sm:$0xff]
        %v277 = vld [vmem:[%s227 + $0xf8] sm:$0xff]
        %vm278 = vcmp.eq.s32.totalorder %v246, 1
        %vm279 = vcmp.eq.s32.totalorder %v247, 1
        %vm280 = vcmp.eq.s32.totalorder %v248, 1
        %vm281 = vcmp.eq.s32.totalorder %v249, 1
        %vm282 = vcmp.eq.s32.totalorder %v250, 1
        %vm283 = vcmp.eq.s32.totalorder %v251, 1
        %vm284 = vcmp.eq.s32.totalorder %v252, 1
        %vm285 = vcmp.eq.s32.totalorder %v253, 1
        %vm286 = vcmp.eq.s32.totalorder %v254, 1
        %vm287 = vcmp.eq.s32.totalorder %v255, 1
        %vm288 = vcmp.eq.s32.totalorder %v256, 1
        %vm289 = vcmp.eq.s32.totalorder %v257, 1
        %vm290 = vcmp.eq.s32.totalorder %v258, 1
        %vm291 = vcmp.eq.s32.totalorder %v259, 1
        %vm292 = vcmp.eq.s32.totalorder %v260, 1
        %vm293 = vcmp.eq.s32.totalorder %v261, 1
        %vm294 = vcmp.eq.s32.totalorder %v262, 1
        %vm295 = vcmp.eq.s32.totalorder %v263, 1
        %vm296 = vcmp.eq.s32.totalorder %v264, 1
        %vm297 = vcmp.eq.s32.totalorder %v265, 1
        %vm298 = vcmp.eq.s32.totalorder %v266, 1
        %vm299 = vcmp.eq.s32.totalorder %v267, 1
        %vm300 = vcmp.eq.s32.totalorder %v268, 1
        %vm301 = vcmp.eq.s32.totalorder %v269, 1
        %vm302 = vcmp.eq.s32.totalorder %v270, 1
        %vm303 = vcmp.eq.s32.totalorder %v271, 1
        %vm304 = vcmp.eq.s32.totalorder %v272, 1
        %vm305 = vcmp.eq.s32.totalorder %v273, 1
        %vm306 = vcmp.eq.s32.totalorder %v274, 1
        %vm307 = vcmp.eq.s32.totalorder %v275, 1
        %vm308 = vcmp.eq.s32.totalorder %v276, 1
        %vm309 = vcmp.eq.s32.totalorder %v277, 1
        %v310 = vsel %vm278, 1, 0
        %v311 = vsel %vm279, 1, 0
        %v312 = vsel %vm280, 1, 0
        %v313 = vsel %vm281, 1, 0
        %v314 = vsel %vm282, 1, 0
        %v315 = vsel %vm283, 1, 0
        %v316 = vsel %vm284, 1, 0
        %v317 = vsel %vm285, 1, 0
        %v318 = vsel %vm286, 1, 0
        %v319 = vsel %vm287, 1, 0
        %v320 = vsel %vm288, 1, 0
        %v321 = vsel %vm289, 1, 0
        %v322 = vsel %vm290, 1, 0
        %v323 = vsel %vm291, 1, 0
        %v324 = vsel %vm292, 1, 0
        %v325 = vsel %vm293, 1, 0
        %v326 = vsel %vm294, 1, 0
        %v327 = vsel %vm295, 1, 0
        %v328 = vsel %vm296, 1, 0
        %v329 = vsel %vm297, 1, 0
        %v330 = vsel %vm298, 1, 0
        %v331 = vsel %vm299, 1, 0
        %v332 = vsel %vm300, 1, 0
        %v333 = vsel %vm301, 1, 0
        %v334 = vsel %vm302, 1, 0
        %v335 = vsel %vm303, 1, 0
        %v336 = vsel %vm304, 1, 0
        %v337 = vsel %vm305, 1, 0
        %v338 = vsel %vm306, 1, 0
        %v339 = vsel %vm307, 1, 0
        %v340 = vsel %vm308, 1, 0
        %v341 = vsel %vm309, 1, 0
        %342 = vset.pattern.permute.xlu0 0
        %343 = vperm.xlu0 %342, %v310
        %v344 = vpop.permute.xlu0 %343
        %345 = vset.pattern.permute.xlu0 0
        %346 = vperm.xlu0 %345, %v311
        %v347 = vpop.permute.xlu0 %346
        %348 = vset.pattern.permute.xlu0 0
        %349 = vperm.xlu0 %348, %v312
        %v350 = vpop.permute.xlu0 %349
        %351 = vset.pattern.permute.xlu0 0
        %352 = vperm.xlu0 %351, %v313
        %v353 = vpop.permute.xlu0 %352
        %354 = vset.pattern.permute.xlu0 0
        %355 = vperm.xlu0 %354, %v314
        %v356 = vpop.permute.xlu0 %355
        %357 = vset.pattern.permute.xlu0 0
        %358 = vperm.xlu0 %357, %v315
        %v359 = vpop.permute.xlu0 %358
        %360 = vset.pattern.permute.xlu0 0
        %361 = vperm.xlu0 %360, %v316
        %v362 = vpop.permute.xlu0 %361
        %363 = vset.pattern.permute.xlu0 0
        %364 = vperm.xlu0 %363, %v317
        %v365 = vpop.permute.xlu0 %364
        %366 = vset.pattern.permute.xlu0 0
        %367 = vperm.xlu0 %366, %v318
        %v368 = vpop.permute.xlu0 %367
        %369 = vset.pattern.permute.xlu0 0
        %370 = vperm.xlu0 %369, %v319
        %v371 = vpop.permute.xlu0 %370
        %372 = vset.pattern.permute.xlu0 0
        %373 = vperm.xlu0 %372, %v320
        %v374 = vpop.permute.xlu0 %373
        %375 = vset.pattern.permute.xlu0 0
        %376 = vperm.xlu0 %375, %v321
        %v377 = vpop.permute.xlu0 %376
        %378 = vset.pattern.permute.xlu0 0
        %379 = vperm.xlu0 %378, %v322
        %v380 = vpop.permute.xlu0 %379
        %381 = vset.pattern.permute.xlu0 0
        %382 = vperm.xlu0 %381, %v323
        %v383 = vpop.permute.xlu0 %382
        %384 = vset.pattern.permute.xlu0 0
        %385 = vperm.xlu0 %384, %v324
        %v386 = vpop.permute.xlu0 %385
        %387 = vset.pattern.permute.xlu0 0
        %388 = vperm.xlu0 %387, %v325
        %v389 = vpop.permute.xlu0 %388
        %390 = vset.pattern.permute.xlu0 0
        %391 = vperm.xlu0 %390, %v326
        %v392 = vpop.permute.xlu0 %391
        %393 = vset.pattern.permute.xlu0 0
        %394 = vperm.xlu0 %393, %v327
        %v395 = vpop.permute.xlu0 %394
        %396 = vset.pattern.permute.xlu0 0
        %397 = vperm.xlu0 %396, %v328
        %v398 = vpop.permute.xlu0 %397
        %399 = vset.pattern.permute.xlu0 0
        %400 = vperm.xlu0 %399, %v329
        %v401 = vpop.permute.xlu0 %400
        %402 = vset.pattern.permute.xlu0 0
        %403 = vperm.xlu0 %402, %v330
        %v404 = vpop.permute.xlu0 %403
        %405 = vset.pattern.permute.xlu0 0
        %406 = vperm.xlu0 %405, %v331
        %v407 = vpop.permute.xlu0 %406
        %408 = vset.pattern.permute.xlu0 0
        %409 = vperm.xlu0 %408, %v332
        %v410 = vpop.permute.xlu0 %409
        %411 = vset.pattern.permute.xlu0 0
        %412 = vperm.xlu0 %411, %v333
        %v413 = vpop.permute.xlu0 %412
        %414 = vset.pattern.permute.xlu0 0
        %415 = vperm.xlu0 %414, %v334
        %v416 = vpop.permute.xlu0 %415
        %417 = vset.pattern.permute.xlu0 0
        %418 = vperm.xlu0 %417, %v335
        %v419 = vpop.permute.xlu0 %418
        %420 = vset.pattern.permute.xlu0 0
        %421 = vperm.xlu0 %420, %v336
        %v422 = vpop.permute.xlu0 %421
        %423 = vset.pattern.permute.xlu0 0
        %424 = vperm.xlu0 %423, %v337
        %v425 = vpop.permute.xlu0 %424
        %426 = vset.pattern.permute.xlu0 0
        %427 = vperm.xlu0 %426, %v338
        %v428 = vpop.permute.xlu0 %427
        %429 = vset.pattern.permute.xlu0 0
        %430 = vperm.xlu0 %429, %v339
        %v431 = vpop.permute.xlu0 %430
        %432 = vset.pattern.permute.xlu0 0
        %433 = vperm.xlu0 %432, %v340
        %v434 = vpop.permute.xlu0 %433
        %435 = vset.pattern.permute.xlu0 0
        %436 = vperm.xlu0 %435, %v341
        %v437 = vpop.permute.xlu0 %436
        %vm438 = vcmp.eq.s32.totalorder %v344, 1
        %vm439 = vcmp.eq.s32.totalorder %v347, 1
        %vm440 = vcmp.eq.s32.totalorder %v350, 1
        %vm441 = vcmp.eq.s32.totalorder %v353, 1
        %vm442 = vcmp.eq.s32.totalorder %v356, 1
        %vm443 = vcmp.eq.s32.totalorder %v359, 1
        %vm444 = vcmp.eq.s32.totalorder %v362, 1
        %vm445 = vcmp.eq.s32.totalorder %v365, 1
        %vm446 = vcmp.eq.s32.totalorder %v368, 1
        %vm447 = vcmp.eq.s32.totalorder %v371, 1
        %vm448 = vcmp.eq.s32.totalorder %v374, 1
        %vm449 = vcmp.eq.s32.totalorder %v377, 1
        %vm450 = vcmp.eq.s32.totalorder %v380, 1
        %vm451 = vcmp.eq.s32.totalorder %v383, 1
        %vm452 = vcmp.eq.s32.totalorder %v386, 1
        %vm453 = vcmp.eq.s32.totalorder %v389, 1
        %vm454 = vcmp.eq.s32.totalorder %v392, 1
        %vm455 = vcmp.eq.s32.totalorder %v395, 1
        %vm456 = vcmp.eq.s32.totalorder %v398, 1
        %vm457 = vcmp.eq.s32.totalorder %v401, 1
        %vm458 = vcmp.eq.s32.totalorder %v404, 1
        %vm459 = vcmp.eq.s32.totalorder %v407, 1
        %vm460 = vcmp.eq.s32.totalorder %v410, 1
        %vm461 = vcmp.eq.s32.totalorder %v413, 1
        %vm462 = vcmp.eq.s32.totalorder %v416, 1
        %vm463 = vcmp.eq.s32.totalorder %v419, 1
        %vm464 = vcmp.eq.s32.totalorder %v422, 1
        %vm465 = vcmp.eq.s32.totalorder %v425, 1
        %vm466 = vcmp.eq.s32.totalorder %v428, 1
        %vm467 = vcmp.eq.s32.totalorder %v431, 1
        %vm468 = vcmp.eq.s32.totalorder %v434, 1
        %vm469 = vcmp.eq.s32.totalorder %v437, 1
        %v470 = vlaneseq
        %v471 = vshrl.u32 %v470, 7
        %v472 = vsub.s32 1, %v471
        %v473 = vrot.slane %v245, %v472
        %v474 = vlaneseq
        %v475 = vshrl.u32 %v474, 7
        %v476 = vsub.s32 0, %v475
        %v477 = vrot.slane %v245, %v476
        %v478 = vsel %vm438, %v473, %v477
        %v479 = vsel %vm439, %v473, %v477
        %v480 = vsel %vm440, %v473, %v477
        %v481 = vsel %vm441, %v473, %v477
        %v482 = vsel %vm442, %v473, %v477
        %v483 = vsel %vm443, %v473, %v477
        %v484 = vsel %vm444, %v473, %v477
        %v485 = vsel %vm445, %v473, %v477
        %v486 = vsel %vm446, %v473, %v477
        %v487 = vsel %vm447, %v473, %v477
        %v488 = vsel %vm448, %v473, %v477
        %v489 = vsel %vm449, %v473, %v477
        %v490 = vsel %vm450, %v473, %v477
        %v491 = vsel %vm451, %v473, %v477
        %v492 = vsel %vm452, %v473, %v477
        %v493 = vsel %vm453, %v473, %v477
        %v494 = vsel %vm454, %v473, %v477
        %v495 = vsel %vm455, %v473, %v477
        %v496 = vsel %vm456, %v473, %v477
        %v497 = vsel %vm457, %v473, %v477
        %v498 = vsel %vm458, %v473, %v477
        %v499 = vsel %vm459, %v473, %v477
        %v500 = vsel %vm460, %v473, %v477
        %v501 = vsel %vm461, %v473, %v477
        %v502 = vsel %vm462, %v473, %v477
        %v503 = vsel %vm463, %v473, %v477
        %v504 = vsel %vm464, %v473, %v477
        %v505 = vsel %vm465, %v473, %v477
        %v506 = vsel %vm466, %v473, %v477
        %v507 = vsel %vm467, %v473, %v477
        %v508 = vsel %vm468, %v473, %v477
        %v509 = vsel %vm469, %v473, %v477
        %vm510 = vcmp.eq.s32.totalorder %v246, 2
        %vm511 = vcmp.eq.s32.totalorder %v247, 2
        %vm512 = vcmp.eq.s32.totalorder %v248, 2
        %vm513 = vcmp.eq.s32.totalorder %v249, 2
        %vm514 = vcmp.eq.s32.totalorder %v250, 2
        %vm515 = vcmp.eq.s32.totalorder %v251, 2
        %vm516 = vcmp.eq.s32.totalorder %v252, 2
        %vm517 = vcmp.eq.s32.totalorder %v253, 2
        %vm518 = vcmp.eq.s32.totalorder %v254, 2
        %vm519 = vcmp.eq.s32.totalorder %v255, 2
        %vm520 = vcmp.eq.s32.totalorder %v256, 2
        %vm521 = vcmp.eq.s32.totalorder %v257, 2
        %vm522 = vcmp.eq.s32.totalorder %v258, 2
        %vm523 = vcmp.eq.s32.totalorder %v259, 2
        %vm524 = vcmp.eq.s32.totalorder %v260, 2
        %vm525 = vcmp.eq.s32.totalorder %v261, 2
        %vm526 = vcmp.eq.s32.totalorder %v262, 2
        %vm527 = vcmp.eq.s32.totalorder %v263, 2
        %vm528 = vcmp.eq.s32.totalorder %v264, 2
        %vm529 = vcmp.eq.s32.totalorder %v265, 2
        %vm530 = vcmp.eq.s32.totalorder %v266, 2
        %vm531 = vcmp.eq.s32.totalorder %v267, 2
        %vm532 = vcmp.eq.s32.totalorder %v268, 2
        %vm533 = vcmp.eq.s32.totalorder %v269, 2
        %vm534 = vcmp.eq.s32.totalorder %v270, 2
        %vm535 = vcmp.eq.s32.totalorder %v271, 2
        %vm536 = vcmp.eq.s32.totalorder %v272, 2
        %vm537 = vcmp.eq.s32.totalorder %v273, 2
        %vm538 = vcmp.eq.s32.totalorder %v274, 2
        %vm539 = vcmp.eq.s32.totalorder %v275, 2
        %vm540 = vcmp.eq.s32.totalorder %v276, 2
        %vm541 = vcmp.eq.s32.totalorder %v277, 2
        %v542 = vsel %vm510, 1, 0
        %v543 = vsel %vm511, 1, 0
        %v544 = vsel %vm512, 1, 0
        %v545 = vsel %vm513, 1, 0
        %v546 = vsel %vm514, 1, 0
        %v547 = vsel %vm515, 1, 0
        %v548 = vsel %vm516, 1, 0
        %v549 = vsel %vm517, 1, 0
        %v550 = vsel %vm518, 1, 0
        %v551 = vsel %vm519, 1, 0
        %v552 = vsel %vm520, 1, 0
        %v553 = vsel %vm521, 1, 0
        %v554 = vsel %vm522, 1, 0
        %v555 = vsel %vm523, 1, 0
        %v556 = vsel %vm524, 1, 0
        %v557 = vsel %vm525, 1, 0
        %v558 = vsel %vm526, 1, 0
        %v559 = vsel %vm527, 1, 0
        %v560 = vsel %vm528, 1, 0
        %v561 = vsel %vm529, 1, 0
        %v562 = vsel %vm530, 1, 0
        %v563 = vsel %vm531, 1, 0
        %v564 = vsel %vm532, 1, 0
        %v565 = vsel %vm533, 1, 0
        %v566 = vsel %vm534, 1, 0
        %v567 = vsel %vm535, 1, 0
        %v568 = vsel %vm536, 1, 0
        %v569 = vsel %vm537, 1, 0
        %v570 = vsel %vm538, 1, 0
        %v571 = vsel %vm539, 1, 0
        %v572 = vsel %vm540, 1, 0
        %v573 = vsel %vm541, 1, 0
        %574 = vset.pattern.permute.xlu0 0
        %575 = vperm.xlu0 %574, %v542
        %v576 = vpop.permute.xlu0 %575
        %577 = vset.pattern.permute.xlu0 0
        %578 = vperm.xlu0 %577, %v543
        %v579 = vpop.permute.xlu0 %578
        %580 = vset.pattern.permute.xlu0 0
        %581 = vperm.xlu0 %580, %v544
        %v582 = vpop.permute.xlu0 %581
        %583 = vset.pattern.permute.xlu0 0
        %584 = vperm.xlu0 %583, %v545
        %v585 = vpop.permute.xlu0 %584
        %586 = vset.pattern.permute.xlu0 0
        %587 = vperm.xlu0 %586, %v546
        %v588 = vpop.permute.xlu0 %587
        %589 = vset.pattern.permute.xlu0 0
        %590 = vperm.xlu0 %589, %v547
        %v591 = vpop.permute.xlu0 %590
        %592 = vset.pattern.permute.xlu0 0
        %593 = vperm.xlu0 %592, %v548
        %v594 = vpop.permute.xlu0 %593
        %595 = vset.pattern.permute.xlu0 0
        %596 = vperm.xlu0 %595, %v549
        %v597 = vpop.permute.xlu0 %596
        %598 = vset.pattern.permute.xlu0 0
        %599 = vperm.xlu0 %598, %v550
        %v600 = vpop.permute.xlu0 %599
        %601 = vset.pattern.permute.xlu0 0
        %602 = vperm.xlu0 %601, %v551
        %v603 = vpop.permute.xlu0 %602
        %604 = vset.pattern.permute.xlu0 0
        %605 = vperm.xlu0 %604, %v552
        %v606 = vpop.permute.xlu0 %605
        %607 = vset.pattern.permute.xlu0 0
        %608 = vperm.xlu0 %607, %v553
        %v609 = vpop.permute.xlu0 %608
        %610 = vset.pattern.permute.xlu0 0
        %611 = vperm.xlu0 %610, %v554
        %v612 = vpop.permute.xlu0 %611
        %613 = vset.pattern.permute.xlu0 0
        %614 = vperm.xlu0 %613, %v555
        %v615 = vpop.permute.xlu0 %614
        %616 = vset.pattern.permute.xlu0 0
        %617 = vperm.xlu0 %616, %v556
        %v618 = vpop.permute.xlu0 %617
        %619 = vset.pattern.permute.xlu0 0
        %620 = vperm.xlu0 %619, %v557
        %v621 = vpop.permute.xlu0 %620
        %622 = vset.pattern.permute.xlu0 0
        %623 = vperm.xlu0 %622, %v558
        %v624 = vpop.permute.xlu0 %623
        %625 = vset.pattern.permute.xlu0 0
        %626 = vperm.xlu0 %625, %v559
        %v627 = vpop.permute.xlu0 %626
        %628 = vset.pattern.permute.xlu0 0
        %629 = vperm.xlu0 %628, %v560
        %v630 = vpop.permute.xlu0 %629
        %631 = vset.pattern.permute.xlu0 0
        %632 = vperm.xlu0 %631, %v561
        %v633 = vpop.permute.xlu0 %632
        %634 = vset.pattern.permute.xlu0 0
        %635 = vperm.xlu0 %634, %v562
        %v636 = vpop.permute.xlu0 %635
        %637 = vset.pattern.permute.xlu0 0
        %638 = vperm.xlu0 %637, %v563
        %v639 = vpop.permute.xlu0 %638
        %640 = vset.pattern.permute.xlu0 0
        %641 = vperm.xlu0 %640, %v564
        %v642 = vpop.permute.xlu0 %641
        %643 = vset.pattern.permute.xlu0 0
        %644 = vperm.xlu0 %643, %v565
        %v645 = vpop.permute.xlu0 %644
        %646 = vset.pattern.permute.xlu0 0
        %647 = vperm.xlu0 %646, %v566
        %v648 = vpop.permute.xlu0 %647
        %649 = vset.pattern.permute.xlu0 0
        %650 = vperm.xlu0 %649, %v567
        %v651 = vpop.permute.xlu0 %650
        %652 = vset.pattern.permute.xlu0 0
        %653 = vperm.xlu0 %652, %v568
        %v654 = vpop.permute.xlu0 %653
        %655 = vset.pattern.permute.xlu0 0
        %656 = vperm.xlu0 %655, %v569
        %v657 = vpop.permute.xlu0 %656
        %658 = vset.pattern.permute.xlu0 0
        %659 = vperm.xlu0 %658, %v570
        %v660 = vpop.permute.xlu0 %659
        %661 = vset.pattern.permute.xlu0 0
        %662 = vperm.xlu0 %661, %v571
        %v663 = vpop.permute.xlu0 %662
        %664 = vset.pattern.permute.xlu0 0
        %665 = vperm.xlu0 %664, %v572
        %v666 = vpop.permute.xlu0 %665
        %667 = vset.pattern.permute.xlu0 0
        %668 = vperm.xlu0 %667, %v573
        %v669 = vpop.permute.xlu0 %668
        %vm670 = vcmp.eq.s32.totalorder %v576, 1
        %vm671 = vcmp.eq.s32.totalorder %v579, 1
        %vm672 = vcmp.eq.s32.totalorder %v582, 1
        %vm673 = vcmp.eq.s32.totalorder %v585, 1
        %vm674 = vcmp.eq.s32.totalorder %v588, 1
        %vm675 = vcmp.eq.s32.totalorder %v591, 1
        %vm676 = vcmp.eq.s32.totalorder %v594, 1
        %vm677 = vcmp.eq.s32.totalorder %v597, 1
        %vm678 = vcmp.eq.s32.totalorder %v600, 1
        %vm679 = vcmp.eq.s32.totalorder %v603, 1
        %vm680 = vcmp.eq.s32.totalorder %v606, 1
        %vm681 = vcmp.eq.s32.totalorder %v609, 1
        %vm682 = vcmp.eq.s32.totalorder %v612, 1
        %vm683 = vcmp.eq.s32.totalorder %v615, 1
        %vm684 = vcmp.eq.s32.totalorder %v618, 1
        %vm685 = vcmp.eq.s32.totalorder %v621, 1
        %vm686 = vcmp.eq.s32.totalorder %v624, 1
        %vm687 = vcmp.eq.s32.totalorder %v627, 1
        %vm688 = vcmp.eq.s32.totalorder %v630, 1
        %vm689 = vcmp.eq.s32.totalorder %v633, 1
        %vm690 = vcmp.eq.s32.totalorder %v636, 1
        %vm691 = vcmp.eq.s32.totalorder %v639, 1
        %vm692 = vcmp.eq.s32.totalorder %v642, 1
        %vm693 = vcmp.eq.s32.totalorder %v645, 1
        %vm694 = vcmp.eq.s32.totalorder %v648, 1
        %vm695 = vcmp.eq.s32.totalorder %v651, 1
        %vm696 = vcmp.eq.s32.totalorder %v654, 1
        %vm697 = vcmp.eq.s32.totalorder %v657, 1
        %vm698 = vcmp.eq.s32.totalorder %v660, 1
        %vm699 = vcmp.eq.s32.totalorder %v663, 1
        %vm700 = vcmp.eq.s32.totalorder %v666, 1
        %vm701 = vcmp.eq.s32.totalorder %v669, 1
        %v702 = vlaneseq
        %v703 = vshrl.u32 %v702, 7
        %v704 = vsub.s32 2, %v703
        %v705 = vrot.slane %v245, %v704
        %v706 = vsel %vm670, %v705, %v478
        %v707 = vsel %vm671, %v705, %v479
        %v708 = vsel %vm672, %v705, %v480
        %v709 = vsel %vm673, %v705, %v481
        %v710 = vsel %vm674, %v705, %v482
        %v711 = vsel %vm675, %v705, %v483
        %v712 = vsel %vm676, %v705, %v484
        %v713 = vsel %vm677, %v705, %v485
        %v714 = vsel %vm678, %v705, %v486
        %v715 = vsel %vm679, %v705, %v487
        %v716 = vsel %vm680, %v705, %v488
        %v717 = vsel %vm681, %v705, %v489
        %v718 = vsel %vm682, %v705, %v490
        %v719 = vsel %vm683, %v705, %v491
        %v720 = vsel %vm684, %v705, %v492
        %v721 = vsel %vm685, %v705, %v493
        %v722 = vsel %vm686, %v705, %v494
        %v723 = vsel %vm687, %v705, %v495
        %v724 = vsel %vm688, %v705, %v496
        %v725 = vsel %vm689, %v705, %v497
        %v726 = vsel %vm690, %v705, %v498
        %v727 = vsel %vm691, %v705, %v499
        %v728 = vsel %vm692, %v705, %v500
        %v729 = vsel %vm693, %v705, %v501
        %v730 = vsel %vm694, %v705, %v502
        %v731 = vsel %vm695, %v705, %v503
        %v732 = vsel %vm696, %v705, %v504
        %v733 = vsel %vm697, %v705, %v505
        %v734 = vsel %vm698, %v705, %v506
        %v735 = vsel %vm699, %v705, %v507
        %v736 = vsel %vm700, %v705, %v508
        %v737 = vsel %vm701, %v705, %v509
        %vm738 = vcmp.eq.s32.totalorder %v246, 3
        %vm739 = vcmp.eq.s32.totalorder %v247, 3
        %vm740 = vcmp.eq.s32.totalorder %v248, 3
        %vm741 = vcmp.eq.s32.totalorder %v249, 3
        %vm742 = vcmp.eq.s32.totalorder %v250, 3
        %vm743 = vcmp.eq.s32.totalorder %v251, 3
        %vm744 = vcmp.eq.s32.totalorder %v252, 3
        %vm745 = vcmp.eq.s32.totalorder %v253, 3
        %vm746 = vcmp.eq.s32.totalorder %v254, 3
        %vm747 = vcmp.eq.s32.totalorder %v255, 3
        %vm748 = vcmp.eq.s32.totalorder %v256, 3
        %vm749 = vcmp.eq.s32.totalorder %v257, 3
        %vm750 = vcmp.eq.s32.totalorder %v258, 3
        %vm751 = vcmp.eq.s32.totalorder %v259, 3
        %vm752 = vcmp.eq.s32.totalorder %v260, 3
        %vm753 = vcmp.eq.s32.totalorder %v261, 3
        %vm754 = vcmp.eq.s32.totalorder %v262, 3
        %vm755 = vcmp.eq.s32.totalorder %v263, 3
        %vm756 = vcmp.eq.s32.totalorder %v264, 3
        %vm757 = vcmp.eq.s32.totalorder %v265, 3
        %vm758 = vcmp.eq.s32.totalorder %v266, 3
        %vm759 = vcmp.eq.s32.totalorder %v267, 3
        %vm760 = vcmp.eq.s32.totalorder %v268, 3
        %vm761 = vcmp.eq.s32.totalorder %v269, 3
        %vm762 = vcmp.eq.s32.totalorder %v270, 3
        %vm763 = vcmp.eq.s32.totalorder %v271, 3
        %vm764 = vcmp.eq.s32.totalorder %v272, 3
        %vm765 = vcmp.eq.s32.totalorder %v273, 3
        %vm766 = vcmp.eq.s32.totalorder %v274, 3
        %vm767 = vcmp.eq.s32.totalorder %v275, 3
        %vm768 = vcmp.eq.s32.totalorder %v276, 3
        %vm769 = vcmp.eq.s32.totalorder %v277, 3
        %v770 = vsel %vm738, 1, 0
        %v771 = vsel %vm739, 1, 0
        %v772 = vsel %vm740, 1, 0
        %v773 = vsel %vm741, 1, 0
        %v774 = vsel %vm742, 1, 0
        %v775 = vsel %vm743, 1, 0
        %v776 = vsel %vm744, 1, 0
        %v777 = vsel %vm745, 1, 0
        %v778 = vsel %vm746, 1, 0
        %v779 = vsel %vm747, 1, 0
        %v780 = vsel %vm748, 1, 0
        %v781 = vsel %vm749, 1, 0
        %v782 = vsel %vm750, 1, 0
        %v783 = vsel %vm751, 1, 0
        %v784 = vsel %vm752, 1, 0
        %v785 = vsel %vm753, 1, 0
        %v786 = vsel %vm754, 1, 0
        %v787 = vsel %vm755, 1, 0
        %v788 = vsel %vm756, 1, 0
        %v789 = vsel %vm757, 1, 0
        %v790 = vsel %vm758, 1, 0
        %v791 = vsel %vm759, 1, 0
        %v792 = vsel %vm760, 1, 0
        %v793 = vsel %vm761, 1, 0
        %v794 = vsel %vm762, 1, 0
        %v795 = vsel %vm763, 1, 0
        %v796 = vsel %vm764, 1, 0
        %v797 = vsel %vm765, 1, 0
        %v798 = vsel %vm766, 1, 0
        %v799 = vsel %vm767, 1, 0
        %v800 = vsel %vm768, 1, 0
        %v801 = vsel %vm769, 1, 0
        %802 = vset.pattern.permute.xlu0 0
        %803 = vperm.xlu0 %802, %v770
        %v804 = vpop.permute.xlu0 %803
        %805 = vset.pattern.permute.xlu0 0
        %806 = vperm.xlu0 %805, %v771
        %v807 = vpop.permute.xlu0 %806
        %808 = vset.pattern.permute.xlu0 0
        %809 = vperm.xlu0 %808, %v772
        %v810 = vpop.permute.xlu0 %809
        %811 = vset.pattern.permute.xlu0 0
        %812 = vperm.xlu0 %811, %v773
        %v813 = vpop.permute.xlu0 %812
        %814 = vset.pattern.permute.xlu0 0
        %815 = vperm.xlu0 %814, %v774
        %v816 = vpop.permute.xlu0 %815
        %817 = vset.pattern.permute.xlu0 0
        %818 = vperm.xlu0 %817, %v775
        %v819 = vpop.permute.xlu0 %818
        %820 = vset.pattern.permute.xlu0 0
        %821 = vperm.xlu0 %820, %v776
        %v822 = vpop.permute.xlu0 %821
        %823 = vset.pattern.permute.xlu0 0
        %824 = vperm.xlu0 %823, %v777
        %v825 = vpop.permute.xlu0 %824
        %826 = vset.pattern.permute.xlu0 0
        %827 = vperm.xlu0 %826, %v778
        %v828 = vpop.permute.xlu0 %827
        %829 = vset.pattern.permute.xlu0 0
        %830 = vperm.xlu0 %829, %v779
        %v831 = vpop.permute.xlu0 %830
        %832 = vset.pattern.permute.xlu0 0
        %833 = vperm.xlu0 %832, %v780
        %v834 = vpop.permute.xlu0 %833
        %835 = vset.pattern.permute.xlu0 0
        %836 = vperm.xlu0 %835, %v781
        %v837 = vpop.permute.xlu0 %836
        %838 = vset.pattern.permute.xlu0 0
        %839 = vperm.xlu0 %838, %v782
        %v840 = vpop.permute.xlu0 %839
        %841 = vset.pattern.permute.xlu0 0
        %842 = vperm.xlu0 %841, %v783
        %v843 = vpop.permute.xlu0 %842
        %844 = vset.pattern.permute.xlu0 0
        %845 = vperm.xlu0 %844, %v784
        %v846 = vpop.permute.xlu0 %845
        %847 = vset.pattern.permute.xlu0 0
        %848 = vperm.xlu0 %847, %v785
        %v849 = vpop.permute.xlu0 %848
        %850 = vset.pattern.permute.xlu0 0
        %851 = vperm.xlu0 %850, %v786
        %v852 = vpop.permute.xlu0 %851
        %853 = vset.pattern.permute.xlu0 0
        %854 = vperm.xlu0 %853, %v787
        %v855 = vpop.permute.xlu0 %854
        %856 = vset.pattern.permute.xlu0 0
        %857 = vperm.xlu0 %856, %v788
        %v858 = vpop.permute.xlu0 %857
        %859 = vset.pattern.permute.xlu0 0
        %860 = vperm.xlu0 %859, %v789
        %v861 = vpop.permute.xlu0 %860
        %862 = vset.pattern.permute.xlu0 0
        %863 = vperm.xlu0 %862, %v790
        %v864 = vpop.permute.xlu0 %863
        %865 = vset.pattern.permute.xlu0 0
        %866 = vperm.xlu0 %865, %v791
        %v867 = vpop.permute.xlu0 %866
        %868 = vset.pattern.permute.xlu0 0
        %869 = vperm.xlu0 %868, %v792
        %v870 = vpop.permute.xlu0 %869
        %871 = vset.pattern.permute.xlu0 0
        %872 = vperm.xlu0 %871, %v793
        %v873 = vpop.permute.xlu0 %872
        %874 = vset.pattern.permute.xlu0 0
        %875 = vperm.xlu0 %874, %v794
        %v876 = vpop.permute.xlu0 %875
        %877 = vset.pattern.permute.xlu0 0
        %878 = vperm.xlu0 %877, %v795
        %v879 = vpop.permute.xlu0 %878
        %880 = vset.pattern.permute.xlu0 0
        %881 = vperm.xlu0 %880, %v796
        %v882 = vpop.permute.xlu0 %881
        %883 = vset.pattern.permute.xlu0 0
        %884 = vperm.xlu0 %883, %v797
        %v885 = vpop.permute.xlu0 %884
        %886 = vset.pattern.permute.xlu0 0
        %887 = vperm.xlu0 %886, %v798
        %v888 = vpop.permute.xlu0 %887
        %889 = vset.pattern.permute.xlu0 0
        %890 = vperm.xlu0 %889, %v799
        %v891 = vpop.permute.xlu0 %890
        %892 = vset.pattern.permute.xlu0 0
        %893 = vperm.xlu0 %892, %v800
        %v894 = vpop.permute.xlu0 %893
        %895 = vset.pattern.permute.xlu0 0
        %896 = vperm.xlu0 %895, %v801
        %v897 = vpop.permute.xlu0 %896
        %vm898 = vcmp.eq.s32.totalorder %v804, 1
        %vm899 = vcmp.eq.s32.totalorder %v807, 1
        %vm900 = vcmp.eq.s32.totalorder %v810, 1
        %vm901 = vcmp.eq.s32.totalorder %v813, 1
        %vm902 = vcmp.eq.s32.totalorder %v816, 1
        %vm903 = vcmp.eq.s32.totalorder %v819, 1
        %vm904 = vcmp.eq.s32.totalorder %v822, 1
        %vm905 = vcmp.eq.s32.totalorder %v825, 1
        %vm906 = vcmp.eq.s32.totalorder %v828, 1
        %vm907 = vcmp.eq.s32.totalorder %v831, 1
        %vm908 = vcmp.eq.s32.totalorder %v834, 1
        %vm909 = vcmp.eq.s32.totalorder %v837, 1
        %vm910 = vcmp.eq.s32.totalorder %v840, 1
        %vm911 = vcmp.eq.s32.totalorder %v843, 1
        %vm912 = vcmp.eq.s32.totalorder %v846, 1
        %vm913 = vcmp.eq.s32.totalorder %v849, 1
        %vm914 = vcmp.eq.s32.totalorder %v852, 1
        %vm915 = vcmp.eq.s32.totalorder %v855, 1
        %vm916 = vcmp.eq.s32.totalorder %v858, 1
        %vm917 = vcmp.eq.s32.totalorder %v861, 1
        %vm918 = vcmp.eq.s32.totalorder %v864, 1
        %vm919 = vcmp.eq.s32.totalorder %v867, 1
        %vm920 = vcmp.eq.s32.totalorder %v870, 1
        %vm921 = vcmp.eq.s32.totalorder %v873, 1
        %vm922 = vcmp.eq.s32.totalorder %v876, 1
        %vm923 = vcmp.eq.s32.totalorder %v879, 1
        %vm924 = vcmp.eq.s32.totalorder %v882, 1
        %vm925 = vcmp.eq.s32.totalorder %v885, 1
        %vm926 = vcmp.eq.s32.totalorder %v888, 1
        %vm927 = vcmp.eq.s32.totalorder %v891, 1
        %vm928 = vcmp.eq.s32.totalorder %v894, 1
        %vm929 = vcmp.eq.s32.totalorder %v897, 1
        %v930 = vlaneseq
        %v931 = vshrl.u32 %v930, 7
        %v932 = vsub.s32 3, %v931
        %v933 = vrot.slane %v245, %v932
        %v934 = vsel %vm898, %v933, %v706
        %v935 = vsel %vm899, %v933, %v707
        %v936 = vsel %vm900, %v933, %v708
        %v937 = vsel %vm901, %v933, %v709
        %v938 = vsel %vm902, %v933, %v710
        %v939 = vsel %vm903, %v933, %v711
        %v940 = vsel %vm904, %v933, %v712
        %v941 = vsel %vm905, %v933, %v713
        %v942 = vsel %vm906, %v933, %v714
        %v943 = vsel %vm907, %v933, %v715
        %v944 = vsel %vm908, %v933, %v716
        %v945 = vsel %vm909, %v933, %v717
        %v946 = vsel %vm910, %v933, %v718
        %v947 = vsel %vm911, %v933, %v719
        %v948 = vsel %vm912, %v933, %v720
        %v949 = vsel %vm913, %v933, %v721
        %v950 = vsel %vm914, %v933, %v722
        %v951 = vsel %vm915, %v933, %v723
        %v952 = vsel %vm916, %v933, %v724
        %v953 = vsel %vm917, %v933, %v725
        %v954 = vsel %vm918, %v933, %v726
        %v955 = vsel %vm919, %v933, %v727
        %v956 = vsel %vm920, %v933, %v728
        %v957 = vsel %vm921, %v933, %v729
        %v958 = vsel %vm922, %v933, %v730
        %v959 = vsel %vm923, %v933, %v731
        %v960 = vsel %vm924, %v933, %v732
        %v961 = vsel %vm925, %v933, %v733
        %v962 = vsel %vm926, %v933, %v734
        %v963 = vsel %vm927, %v933, %v735
        %v964 = vsel %vm928, %v933, %v736
        %v965 = vsel %vm929, %v933, %v737
        %v966 = vld [vmem:[%s213] sm:$0xff]
        %v967 = vld [vmem:[%s213 + $0x8] sm:$0xff]
        %v968 = vld [vmem:[%s213 + $0x10] sm:$0xff]
        %v969 = vld [vmem:[%s213 + $0x18] sm:$0xff]
        %v970 = vld [vmem:[%s213 + $0x20] sm:$0xff]
        %v971 = vld [vmem:[%s213 + $0x28] sm:$0xff]
        %v972 = vld [vmem:[%s213 + $0x30] sm:$0xff]
        %v973 = vld [vmem:[%s213 + $0x38] sm:$0xff]
        %v974 = vld [vmem:[%s213 + $0x40] sm:$0xff]
        %v975 = vld [vmem:[%s213 + $0x48] sm:$0xff]
        %v976 = vld [vmem:[%s213 + $0x50] sm:$0xff]
        %v977 = vld [vmem:[%s213 + $0x58] sm:$0xff]
        %v978 = vld [vmem:[%s213 + $0x60] sm:$0xff]
        %v979 = vld [vmem:[%s213 + $0x68] sm:$0xff]
        %v980 = vld [vmem:[%s213 + $0x70] sm:$0xff]
        %v981 = vld [vmem:[%s213 + $0x78] sm:$0xff]
        %v982 = vld [vmem:[%s213 + $0x80] sm:$0xff]
        %v983 = vld [vmem:[%s213 + $0x88] sm:$0xff]
        %v984 = vld [vmem:[%s213 + $0x90] sm:$0xff]
        %v985 = vld [vmem:[%s213 + $0x98] sm:$0xff]
        %v986 = vld [vmem:[%s213 + $0xa0] sm:$0xff]
        %v987 = vld [vmem:[%s213 + $0xa8] sm:$0xff]
        %v988 = vld [vmem:[%s213 + $0xb0] sm:$0xff]
        %v989 = vld [vmem:[%s213 + $0xb8] sm:$0xff]
        %v990 = vld [vmem:[%s213 + $0xc0] sm:$0xff]
        %v991 = vld [vmem:[%s213 + $0xc8] sm:$0xff]
        %v992 = vld [vmem:[%s213 + $0xd0] sm:$0xff]
        %v993 = vld [vmem:[%s213 + $0xd8] sm:$0xff]
        %v994 = vld [vmem:[%s213 + $0xe0] sm:$0xff]
        %v995 = vld [vmem:[%s213 + $0xe8] sm:$0xff]
        %v996 = vld [vmem:[%s213 + $0xf0] sm:$0xff]
        %v997 = vld [vmem:[%s213 + $0xf8] sm:$0xff]
        %v998 = vmul.f32 %v966, %v934
        %v999 = vmul.f32 %v967, %v935
        %v1000 = vmul.f32 %v968, %v936
        %v1001 = vmul.f32 %v969, %v937
        %v1002 = vmul.f32 %v970, %v938
        %v1003 = vmul.f32 %v971, %v939
        %v1004 = vmul.f32 %v972, %v940
        %v1005 = vmul.f32 %v973, %v941
        %v1006 = vmul.f32 %v974, %v942
        %v1007 = vmul.f32 %v975, %v943
        %v1008 = vmul.f32 %v976, %v944
        %v1009 = vmul.f32 %v977, %v945
        %v1010 = vmul.f32 %v978, %v946
        %v1011 = vmul.f32 %v979, %v947
        %v1012 = vmul.f32 %v980, %v948
        %v1013 = vmul.f32 %v981, %v949
        %v1014 = vmul.f32 %v982, %v950
        %v1015 = vmul.f32 %v983, %v951
        %v1016 = vmul.f32 %v984, %v952
        %v1017 = vmul.f32 %v985, %v953
        %v1018 = vmul.f32 %v986, %v954
        %v1019 = vmul.f32 %v987, %v955
        %v1020 = vmul.f32 %v988, %v956
        %v1021 = vmul.f32 %v989, %v957
        %v1022 = vmul.f32 %v990, %v958
        %v1023 = vmul.f32 %v991, %v959
        %v1024 = vmul.f32 %v992, %v960
        %v1025 = vmul.f32 %v993, %v961
        %v1026 = vmul.f32 %v994, %v962
        %v1027 = vmul.f32 %v995, %v963
        %v1028 = vmul.f32 %v996, %v964
        %v1029 = vmul.f32 %v997, %v965
        %1030 = vst [vmem:[%s204] sm:$0xff] %v998
        %1031 = vst [vmem:[%s204 + $0x8] sm:$0xff] %v999
        %1032 = vst [vmem:[%s204 + $0x10] sm:$0xff] %v1000
        %1033 = vst [vmem:[%s204 + $0x18] sm:$0xff] %v1001
        %1034 = vst [vmem:[%s204 + $0x20] sm:$0xff] %v1002
        %1035 = vst [vmem:[%s204 + $0x28] sm:$0xff] %v1003
        %1036 = vst [vmem:[%s204 + $0x30] sm:$0xff] %v1004
        %1037 = vst [vmem:[%s204 + $0x38] sm:$0xff] %v1005
        %1038 = vst [vmem:[%s204 + $0x40] sm:$0xff] %v1006
        %1039 = vst [vmem:[%s204 + $0x48] sm:$0xff] %v1007
        %1040 = vst [vmem:[%s204 + $0x50] sm:$0xff] %v1008
        %1041 = vst [vmem:[%s204 + $0x58] sm:$0xff] %v1009
        %1042 = vst [vmem:[%s204 + $0x60] sm:$0xff] %v1010
        %1043 = vst [vmem:[%s204 + $0x68] sm:$0xff] %v1011
        %1044 = vst [vmem:[%s204 + $0x70] sm:$0xff] %v1012
        %1045 = vst [vmem:[%s204 + $0x78] sm:$0xff] %v1013
        %1046 = vst [vmem:[%s204 + $0x80] sm:$0xff] %v1014
        %1047 = vst [vmem:[%s204 + $0x88] sm:$0xff] %v1015
        %1048 = vst [vmem:[%s204 + $0x90] sm:$0xff] %v1016
        %1049 = vst [vmem:[%s204 + $0x98] sm:$0xff] %v1017
        %1050 = vst [vmem:[%s204 + $0xa0] sm:$0xff] %v1018
        %1051 = vst [vmem:[%s204 + $0xa8] sm:$0xff] %v1019
        %1052 = vst [vmem:[%s204 + $0xb0] sm:$0xff] %v1020
        %1053 = vst [vmem:[%s204 + $0xb8] sm:$0xff] %v1021
        %1054 = vst [vmem:[%s204 + $0xc0] sm:$0xff] %v1022
        %1055 = vst [vmem:[%s204 + $0xc8] sm:$0xff] %v1023
        %1056 = vst [vmem:[%s204 + $0xd0] sm:$0xff] %v1024
        %1057 = vst [vmem:[%s204 + $0xd8] sm:$0xff] %v1025
        %1058 = vst [vmem:[%s204 + $0xe0] sm:$0xff] %v1026
        %1059 = vst [vmem:[%s204 + $0xe8] sm:$0xff] %v1027
        %1060 = vst [vmem:[%s204 + $0xf0] sm:$0xff] %v1028
        %1061 = vst [vmem:[%s204 + $0xf8] sm:$0xff] %v1029
        %s1062 = sand.u32 %s98, 1
        %s1063 = scalar_lea.sflag [#allocation3], %s1062
        %s1064 = sand.u32 %s98, 1
        %s1065 = smul.addr %s1064, 256
        %s1066 = scalar_lea.vmem [#allocation2], %s1065
        // Predicated region
        $region33: #{tpu_custom_call.1} parent=31 // pred_check
          %p1067 = pneg %p108
        $region34: #{tpu_custom_call.1} parent=31 // pred_check_branch
          %1069 = sbr.rel (%p1067) target = $region36
        $region35: #{tpu_custom_call.1} parent=31 // pred_region
          %s1070 = smul.u32 32, %s17
          %s1071 = ssub.s32 125, %s1070
          %p1072 = scmp.lt.s32.totalorder %s1071, 32
          %s1073 = scalar_select %p1072, %s1071, 32
          %s1074 = smul.u32 128, %s1073
          %s1076 = ssub.s32 4096, %s1074
          %1077 = vsyncadd %s1063, %s1076
          %p1078 = scmp.ne.s32.totalorder 0, %s1074
          %s1079 = smul.addr %s1070, 128
          %s1080 = scalar_lea.hbm %s3, %s1079
          %s1081 = smul.u32 8, %s1073
          %s1082 = sshll.u32 %s1066, 4
          %s1083 = int_to_ptr.vmem [resolvable:$true] %s1082
          %s1084 = sshll.u32 %s1081, 4
          %1088 = dma.vmem_to_hbm [thread:$0]  (%p1078), %s1083, %s1084, %s1080, %s1063, 128, 128, 8
        $region36: #{tpu_custom_call.1} parent=31 // pred_fallthru
          _
      $region32: #{tpu_custom_call.1} parent=5 // pred_fallthru
        _
      %p1089 = scmp.le.s32.totalorder 2, %s12
      // Predicated region
      $region37: #{tpu_custom_call.1} parent=5 // pred_check
        %p1090 = pneg %p1089
      $region38: #{tpu_custom_call.1} parent=5 // pred_check_branch
        %1092 = sbr.rel (%p1090) target = $region40
      $region39: #{tpu_custom_call.1} parent=5 // pred_region
        %s1093 = ssub.s32 %s12, 2
        // Predicated region
        $region41: #{tpu_custom_call.1} parent=39 // pred_check
          %p1094 = pneg %p114
        $region42: #{tpu_custom_call.1} parent=39 // pred_check_branch
          %1096 = sbr.rel (%p1094) target = $region44
        $region43: #{tpu_custom_call.1} parent=39 // pred_region
          %s1097 = sand.u32 %s99, 1
          %s1098 = scalar_lea.sflag [#allocation3], %s1097
          %s1099 = sand.u32 %s99, 1
          %s1100 = smul.addr %s1099, 256
          %s1101 = scalar_lea.vmem [#allocation2], %s1100
          %1102 = dma.done %s1098, 4096
        $region44: #{tpu_custom_call.1} parent=39 // pred_fallthru
          _
      $region40: #{tpu_custom_call.1} parent=5 // pred_fallthru
        _
    $region6: #{tpu_custom_call.1} parent=1 // loop_footer
      %s16 = sadd.s32 1, %s12
    $region7: #{tpu_custom_call.1} parent=1 // loop_footer_branch
      %11 = sbr.rel target = $region3
    $region8: #{tpu_custom_call.1} parent=1 // loop_exit
      _
    %1103 = vsyncpa [#allocation3], 1
    %s1104 = scalar_lea.sflag [#allocation3], 1
    %1105 = vsyncpa %s1104, 1

</llo_original>
